<compile_context>
chip_gen: v7x
topology: tpu7x:2x2x1
jax: 0.10.0
libtpu: 0.0.40
codegen_flags: <defaults>
</compile_context>

<pallas_src>
import functools

import jax
import jax.numpy as jnp
from jax.experimental import pallas as pl
from jax.experimental.pallas import tpu as pltpu

EPS = 0.001
_LANE = 128
_SUBLANE = 8


def _round_up(x, m):
    return (x + m - 1) // m * m


def _device_kind():
    try:
        return jax.devices()[0].device_kind.lower()
    except Exception:
        return ""


def _is_v7x():
    kind = _device_kind()
    return ("v7" in kind) or ("7x" in kind) or kind.startswith("tpu7")


def _vmem_config():
    """(tile_vmem_budget, vmem_limit_bytes) sized per TPU generation."""
    kind = _device_kind()
    if ("v2" in kind) or ("v3" in kind):
        # 16 MiB physical VMEM
        return 8 * 1024 * 1024, 14 * 1024 * 1024
    if any(g in kind for g in ("v4", "v5", "v6")):
        # 128 MiB physical VMEM generations
        return 72 * 1024 * 1024, 96 * 1024 * 1024
    # v7x (64 MiB physical per TensorCore) and unknown chips: conservative
    return 36 * 1024 * 1024, 48 * 1024 * 1024


def _jaccard_partial_kernel(*refs, has_weight, rows, rows_tile, k_per_shard,
                            needs_mask):
    if has_weight:
        p_ref, t_ref, w_ref, inter_ref, total_ref = refs
    else:
        p_ref, t_ref, inter_ref, total_ref = refs
        w_ref = None

    k = pl.program_id(2)

    @pl.when(k == 0)
    def _():
        inter_ref[...] = jnp.zeros_like(inter_ref)
        total_ref[...] = jnp.zeros_like(total_ref)

    p = p_ref[...].astype(jnp.float32)          # (bb, rows_tile, 128)
    t = t_ref[...].astype(jnp.float32)
    if has_weight:
        w = w_ref[...].astype(jnp.float32)
        p = p * w
        t = t * w

    if needs_mask:
        # Logical (unclamped) global row index of this block; rows >= `rows`
        # are out-of-bounds garbage and are zeroed (neutral for both sums).
        s = pl.program_id(0)
        row0 = (s * k_per_shard + k) * rows_tile
        row_idx = row0 + jax.lax.broadcasted_iota(
            jnp.int32, (1, p.shape[1], _LANE), 1)
        valid = row_idx < rows                  # (1, rows_tile, 128), broadcasts
        p = jnp.where(valid, p, 0.0)
        t = jnp.where(valid, t, 0.0)

    # Lane-dense partial sums accumulated directly in the resident out blocks.
    # The rows-axis reduce is hidden under the HBM DMA for these tile sizes.
    inter_ref[0] += jnp.sum(p * t, axis=1)      # (bb, 128)
    total_ref[0] += jnp.sum(p + t, axis=1)


def jaccard_loss(preds, trues, weight=None, size_average=True, *,
                 _tile_vmem_budget=None, _vmem_limit=None, _force_shards=None):
    """Pallas implementation of JaccardLoss.forward / jaccard()."""
    num = preds.shape[0]
    p2 = preds.reshape(num, -1)                 # native dtype, no host-side cast
    t2 = trues.reshape(num, -1)
    inputs = [p2, t2]
    has_weight = weight is not None
    if has_weight:
        inputs.append(weight.reshape(num, -1))

    d = p2.shape[1]
    d_pad = _round_up(d, _LANE)                 # pad only to the next 128
    rows = d_pad // _LANE

    def _prep(x):
        if d_pad != d:
            x = jnp.pad(x, ((0, 0), (0, d_pad - d)))   # zero pad: neutral
        return x.reshape(num, rows, _LANE)

    inputs = [_prep(x) for x in inputs]

    # Batch blocking: bounds VMEM independent of num, keeps DMA runs long, and
    # provides a natural "parallel" axis.
    bb = num if num < _SUBLANE else _SUBLANE
    num_blocks = pl.cdiv(num, bb)

    tile_budget, vmem_limit = _vmem_config()
    if _tile_vmem_budget is not None:
        tile_budget = _tile_vmem_budget
    if _vmem_limit is not None:
        vmem_limit = _vmem_limit

    # Rows per step from the VMEM budget: double-buffered native-dtype inputs
    # plus an allowance for the in-kernel f32 temporaries.
    n_in = len(inputs)
    per_row_dbuf = 2 * bb * _LANE * sum(jnp.dtype(x.dtype).itemsize for x in inputs)
    per_row_temp = (n_in + 2) * bb * _LANE * 4
    budget_rows = max(_SUBLANE,
                      (tile_budget // (per_row_dbuf + per_row_temp))
                      // _SUBLANE * _SUBLANE)
    if budget_rows >= rows:
        rows_tile = rows                        # single step; full-dim block is legal
    else:
        rows_tile = min(budget_rows, rows // _SUBLANE * _SUBLANE)
    k_total = pl.cdiv(rows, rows_tile)

    # Shard the row reduction across the two TensorCores only on v7x, and only
    # when the batch axis gives no parallel work and there are enough tiles.
    if _force_shards is not None:
        num_shards = _force_shards
    else:
        num_shards = 2 if (_is_v7x() and num_blocks == 1 and k_total >= 4) else 1
    k_per_shard = pl.cdiv(k_total, num_shards)
    needs_mask = num_shards * k_per_shard * rows_tile > rows

    def in_map(s, b, k):
        # Clamp so a block never *starts* out of bounds (the mask still zeroes
        # every logical row >= rows for such blocks).
        kb = jnp.minimum(s * k_per_shard + k, k_total - 1)
        return (b, kb, 0)

    def out_map(s, b, k):
        return (s, b, 0)                        # resident across k -> accumulator

    in_spec = pl.BlockSpec((bb, rows_tile, _LANE), in_map)
    out_spec = pl.BlockSpec((1, bb, _LANE), out_map)

    kernel = functools.partial(
        _jaccard_partial_kernel, has_weight=has_weight, rows=rows,
        rows_tile=rows_tile, k_per_shard=k_per_shard, needs_mask=needs_mask)

    inter_p, total_p = pl.pallas_call(
        kernel,
        out_shape=(jax.ShapeDtypeStruct((num_shards, num, _LANE), jnp.float32),
                   jax.ShapeDtypeStruct((num_shards, num, _LANE), jnp.float32)),
        grid_spec=pltpu.PrefetchScalarGridSpec(
            num_scalar_prefetch=0,
            grid=(num_shards, num_blocks, k_per_shard),
            in_specs=[in_spec] * n_in,
            out_specs=[out_spec, out_spec],
        ),
        compiler_params=pltpu.CompilerParams(
            dimension_semantics=("parallel", "parallel", "arbitrary"),
            vmem_limit_bytes=vmem_limit,
        ),
    )(*inputs)

    # Tiny O(num) epilogue: combine shard/lane partials and finalize.
    inter = jnp.sum(inter_p, axis=(0, 2))       # (num,)
    total = jnp.sum(total_p, axis=(0, 2))       # (num,)
    scores = (inter + EPS) / (total - inter + EPS)
    score = jnp.sum(scores)
    if size_average:
        score = score / num
    return jnp.clip(score, 0.0, 1.0)


def _jaccard_ref(preds, trues, weight=None, size_average=True):
    num = preds.shape[0]
    p = preds.reshape(num, -1).astype(jnp.float32)
    t = trues.reshape(num, -1).astype(jnp.float32)
    if weight is not None:
        w = weight.reshape(num, -1).astype(jnp.float32)
        p = p * w
        t = t * w
    inter = jnp.sum(p * t, axis=1)
    scores = (inter + EPS) / (jnp.sum(p + t, axis=1) - inter + EPS)
    score = jnp.sum(scores)
    if size_average:
        score = score / num
    return jnp.clip(score, 0.0, 1.0)


if __name__ == "__main__":
    key = jax.random.PRNGKey(0)
    k1, k2, k3, k4, k5, k6, k7, k8, k9 = jax.random.split(key, 9)

    # 1) Main case: NCHW sigmoid preds vs. binary masks.
    x = jax.nn.sigmoid(jax.random.normal(k1, (2, 4, 16, 16), dtype=jnp.float32))
    y = (jax.random.uniform(k2, (2, 4, 16, 16)) > 0.5).astype(jnp.float32)
    out = jax.block_until_ready(jaccard_loss(x, y, weight=None, size_average=True))
    ref = _jaccard_ref(x, y, weight=None, size_average=True)
    assert jnp.allclose(out, ref, atol=1e-5, rtol=1e-5), (out, ref)

    # 2) Fused-weight path.
    w = jax.random.uniform(k3, (2, 4, 16, 16), dtype=jnp.float32)
    out_w = jax.block_until_ready(jaccard_loss(x, y, weight=w, size_average=True))
    ref_w = _jaccard_ref(x, y, weight=w, size_average=True)
    assert jnp.allclose(out_w, ref_w, atol=1e-5, rtol=1e-5), (out_w, ref_w)

    # 3) Ragged D (d % 128 != 0 -> small lane pad path).
    xr = jax.nn.sigmoid(jax.random.normal(k4, (2, 3, 5, 7), dtype=jnp.float32))
    yr = (jax.random.uniform(k5, (2, 3, 5, 7)) > 0.5).astype(jnp.float32)
    out_r = jax.block_until_ready(jaccard_loss(xr, yr))
    ref_r = _jaccard_ref(xr, yr)
    assert jnp.allclose(out_r, ref_r, atol=1e-5, rtol=1e-5), (out_r, ref_r)

    # 4) Force multi-tile reduction + row masking + index clamping + 2 shards
    #    (exercises the paths that big inputs / v7x would take).
    xm = jax.nn.sigmoid(jax.random.normal(k6, (2, 1, 64, 68), dtype=jnp.float32))
    ym = (jax.random.uniform(k7, (2, 1, 64, 68)) > 0.5).astype(jnp.float32)
    out_m = jax.block_until_ready(
        jaccard_loss(xm, ym, _tile_vmem_budget=64 * 1024, _force_shards=2))
    ref_m = _jaccard_ref(xm, ym)
    assert jnp.allclose(out_m, ref_m, atol=1e-5, rtol=1e-5), (out_m, ref_m)

    # 5) Batch larger than the batch block (partial last batch block).
    xb = jax.nn.sigmoid(jax.random.normal(k8, (10, 4, 8, 16), dtype=jnp.float32))
    yb = (jax.random.uniform(k9, (10, 4, 8, 16)) > 0.5).astype(jnp.float32)
    out_b = jax.block_until_ready(jaccard_loss(xb, yb, size_average=True))
    ref_b = _jaccard_ref(xb, yb, size_average=True)
    assert jnp.allclose(out_b, ref_b, atol=1e-5, rtol=1e-5), (out_b, ref_b)

    print("KERNEL_OK")
</pallas_src>

<mosaic_0001>
module attributes {stable_mosaic.version = 11 : i64} {
  func.func @_jaccard_partial_kernel(%arg0: i32, %arg1: i32, %arg2: i32, %arg3: memref<2x8x128xf32, #tpu.memory_space<vmem>>, %arg4: memref<2x8x128xf32, #tpu.memory_space<vmem>>, %arg5: memref<1x2x128xf32, #tpu.memory_space<vmem>>, %arg6: memref<1x2x128xf32, #tpu.memory_space<vmem>>) attributes {dimension_semantics = [#tpu.dimension_semantics<parallel>, #tpu.dimension_semantics<parallel>, #tpu.dimension_semantics<arbitrary>], iteration_bounds = array<i64: 1, 1, 1>, scalar_prefetch = 0 : i64, scratch_operands = 0 : i64, tpu.core_type = #tpu.core_type<tc>, window_params = [{transform_indices = @transform_0, window_bounds = array<i64: 2, 8, 128>}, {transform_indices = @transform_1, window_bounds = array<i64: 2, 8, 128>}, {transform_indices = @transform_2, window_bounds = array<i64: 1, 2, 128>}, {transform_indices = @transform_3, window_bounds = array<i64: 1, 2, 128>}]} {
    %c0_i32 = arith.constant 0 : i32
    %0 = arith.cmpi eq, %arg2, %c0_i32 : i32
    %1 = arith.extui %0 : i1 to i32
    %c0_i32_0 = arith.constant 0 : i32
    %2 = arith.cmpi ne, %1, %c0_i32_0 : i32
    scf.if %2 {
      %cst_19 = arith.constant 0.000000e+00 : f32
      %21 = vector.broadcast %cst_19 : f32 to vector<1x2x128xf32>
      %c0_20 = arith.constant 0 : index
      %c0_21 = arith.constant 0 : index
      %c0_22 = arith.constant 0 : index
      %22 = vector.load %arg5[%c0_20, %c0_21, %c0_22] : memref<1x2x128xf32, #tpu.memory_space<vmem>>, vector<1x2x128xf32>
      tpu.vector_store %arg5[%c0_20, %c0_21, %c0_22], %21 {strides = array<i32>} : memref<1x2x128xf32, #tpu.memory_space<vmem>>, vector<1x2x128xf32>,
      %cst_23 = arith.constant 0.000000e+00 : f32
      %23 = vector.broadcast %cst_23 : f32 to vector<1x2x128xf32>
      %c0_24 = arith.constant 0 : index
      %c0_25 = arith.constant 0 : index
      %c0_26 = arith.constant 0 : index
      %24 = vector.load %arg6[%c0_24, %c0_25, %c0_26] : memref<1x2x128xf32, #tpu.memory_space<vmem>>, vector<1x2x128xf32>
      tpu.vector_store %arg6[%c0_24, %c0_25, %c0_26], %23 {strides = array<i32>} : memref<1x2x128xf32, #tpu.memory_space<vmem>>, vector<1x2x128xf32>,
    } else {
    }
    %c0 = arith.constant 0 : index
    %c0_1 = arith.constant 0 : index
    %c0_2 = arith.constant 0 : index
    %3 = vector.load %arg3[%c0, %c0_1, %c0_2] : memref<2x8x128xf32, #tpu.memory_space<vmem>>, vector<2x8x128xf32>
    %c0_3 = arith.constant 0 : index
    %c0_4 = arith.constant 0 : index
    %c0_5 = arith.constant 0 : index
    %4 = vector.load %arg4[%c0_3, %c0_4, %c0_5] : memref<2x8x128xf32, #tpu.memory_space<vmem>>, vector<2x8x128xf32>
    %c0_6 = arith.constant 0 : index
    %c0_7 = arith.constant 0 : index
    %c0_8 = arith.constant 0 : index
    %5 = vector.load %arg5[%c0_6, %c0_7, %c0_8] : memref<1x2x128xf32, #tpu.memory_space<vmem>>, vector<1x2x128xf32>
    %6 = vector.shape_cast %5 : vector<1x2x128xf32> to vector<2x128xf32>
    %7 = arith.mulf %3, %4 : vector<2x8x128xf32>
    %cst = arith.constant dense<0.000000e+00> : vector<2x128xf32>
    %8 = vector.multi_reduction <add>, %7, %cst [1] : vector<2x8x128xf32> to vector<2x128xf32>
    %9 = arith.addf %6, %8 : vector<2x128xf32>
    %c0_9 = arith.constant 0 : index
    %c0_10 = arith.constant 0 : index
    %c0_11 = arith.constant 0 : index
    %10 = vector.load %arg5[%c0_9, %c0_10, %c0_11] : memref<1x2x128xf32, #tpu.memory_space<vmem>>, vector<1x2x128xf32>
    %11 = vector.shape_cast %10 : vector<1x2x128xf32> to vector<2x128xf32>
    %12 = vector.shape_cast %9 : vector<2x128xf32> to vector<1x2x128xf32>
    tpu.vector_store %arg5[%c0_9, %c0_10, %c0_11], %12 {strides = array<i32>} : memref<1x2x128xf32, #tpu.memory_space<vmem>>, vector<1x2x128xf32>,
    %c0_12 = arith.constant 0 : index
    %c0_13 = arith.constant 0 : index
    %c0_14 = arith.constant 0 : index
    %13 = vector.load %arg6[%c0_12, %c0_13, %c0_14] : memref<1x2x128xf32, #tpu.memory_space<vmem>>, vector<1x2x128xf32>
    %14 = vector.shape_cast %13 : vector<1x2x128xf32> to vector<2x128xf32>
    %15 = arith.addf %3, %4 : vector<2x8x128xf32>
    %cst_15 = arith.constant dense<0.000000e+00> : vector<2x128xf32>
    %16 = vector.multi_reduction <add>, %15, %cst_15 [1] : vector<2x8x128xf32> to vector<2x128xf32>
    %17 = arith.addf %14, %16 : vector<2x128xf32>
    %c0_16 = arith.constant 0 : index
    %c0_17 = arith.constant 0 : index
    %c0_18 = arith.constant 0 : index
    %18 = vector.load %arg6[%c0_16, %c0_17, %c0_18] : memref<1x2x128xf32, #tpu.memory_space<vmem>>, vector<1x2x128xf32>
    %19 = vector.shape_cast %18 : vector<1x2x128xf32> to vector<2x128xf32>
    %20 = vector.shape_cast %17 : vector<2x128xf32> to vector<1x2x128xf32>
    tpu.vector_store %arg6[%c0_16, %c0_17, %c0_18], %20 {strides = array<i32>} : memref<1x2x128xf32, #tpu.memory_space<vmem>>, vector<1x2x128xf32>,
    return
  }
  func.func @transform_0(%arg0: i32, %arg1: i32, %arg2: i32) -> (i32, i32, i32) {
    %c1_i32 = arith.constant 1 : i32
    %0 = arith.muli %arg0, %c1_i32 : i32
    %1 = arith.addi %0, %arg2 : i32
    %c0_i32 = arith.constant 0 : i32
    %2 = arith.minsi %1, %c0_i32 : i32
    %c0_i32_0 = arith.constant 0 : i32
    %c0_i32_1 = arith.constant 0 : i32
    return %arg1, %2, %c0_i32_0 : i32, i32, i32
  }
  func.func @transform_1(%arg0: i32, %arg1: i32, %arg2: i32) -> (i32, i32, i32) {
    %c1_i32 = arith.constant 1 : i32
    %0 = arith.muli %arg0, %c1_i32 : i32
    %1 = arith.addi %0, %arg2 : i32
    %c0_i32 = arith.constant 0 : i32
    %2 = arith.minsi %1, %c0_i32 : i32
    %c0_i32_0 = arith.constant 0 : i32
    %c0_i32_1 = arith.constant 0 : i32
    return %arg1, %2, %c0_i32_0 : i32, i32, i32
  }
  func.func @transform_2(%arg0: i32, %arg1: i32, %arg2: i32) -> (i32, i32, i32) {
    %c0_i32 = arith.constant 0 : i32
    %c0_i32_0 = arith.constant 0 : i32
    return %arg0, %arg1, %c0_i32 : i32, i32, i32
  }
  func.func @transform_3(%arg0: i32, %arg1: i32, %arg2: i32) -> (i32, i32, i32) {
    %c0_i32 = arith.constant 0 : i32
    %c0_i32_0 = arith.constant 0 : i32
    return %arg0, %arg1, %c0_i32 : i32, i32, i32
  }
}

</mosaic_0001>

<llo_original>
// kernel: tpu_custom_call.1
$region0: #{tpu_custom_call.1}
  #allocation0 [shape = 'u32[]', space=smem, size = 0x4, offset = 0x4, fixed_abs, tag = 'smem constant byte address 0x4 - core index']
  #allocation1 [shape = 'u32[144,128]{1,0:T(1,128)}', space=vmem, size = 0x12000, scoped, tag = 'internal scratch']
  %s0 = inlined_call_operand.hbm [shape: f32[2,8,128], index: 0, kind: input, shape index: {}]
  %s1 = inlined_call_operand.hbm [shape: f32[2,8,128], index: 1, kind: input, shape index: {}]
  %s2 = inlined_call_operand.hbm [shape: f32[1,2,128], index: 2, kind: output, shape index: {0}]
  %s3 = inlined_call_operand.hbm [shape: f32[1,2,128], index: 3, kind: output, shape index: {1}]
  %4 = xla_tuple %s2, %s3
  %s5 = sld [smem:[#allocation0]]
  $region38: #{tpu_custom_call.1} parent=0
    _
  %s7 = ssub.s32 1, %s5
  %s8 = scalar_select 0, %s7, %s5
  $region1: #{tpu_custom_call.1} parent=0
    #allocation2 [shape = 'u8[8192]{0}', space=vmem, size = 0x2000, scoped, tag = 'input window, operand 0, single buffered']
    #allocation3 [shape = 's32[1]{0}', space=sflag, size = 0x4, scoped, tag = 'scoped memory for tpu_custom_call.1']
    #allocation4 [shape = 's32[1]{0}', space=sflag, size = 0x4, scoped, tag = 'scoped memory for tpu_custom_call.1']
    #allocation5 [shape = 'u8[8192]{0}', space=vmem, size = 0x2000, scoped, tag = 'input window, operand 1, single buffered']
    #allocation6 [shape = 's32[1]{0}', space=sflag, size = 0x4, scoped, tag = 'scoped memory for tpu_custom_call.1']
    #allocation7 [shape = 'u8[1024]{0}', space=vmem, size = 0x400, scoped, tag = 'output window, operand 0, single buffered']
    #allocation8 [shape = 'u8[1024]{0}', space=vmem, size = 0x400, scoped, tag = 'output window, operand 1, single buffered']
    #allocation9 [shape = 's32[1]{0}', space=sflag, size = 0x4, scoped, tag = 'scoped memory for tpu_custom_call.1']
    %9 = vsyncpa [#allocation3], 0
    %10 = vsyncpa [#allocation6], 0
    %11 = vsyncpa [#allocation4], 0
    %12 = vsyncpa [#allocation9], 0
    // Predicated region
    $region2: #{tpu_custom_call.1} parent=1 // pred_check
      _
    $region3: #{tpu_custom_call.1} parent=1 // pred_check_branch
      %14 = sbr.rel (0) target = $region5
    $region4: #{tpu_custom_call.1} parent=1 // pred_region
      %s15 = sadd.s32 0, 0
      %p16 = scmp.lt.s32.totalorder %s15, 0
      %s17 = scalar_select %p16, %s15, 0
      %s19 = ssub.s32 256, 256
      %20 = vsyncadd [#allocation3], %s19
      %s21 = smul.addr %s17, 128
      %s22 = scalar_lea.hbm %s0, %s21
      %s23 = sshll.u32 [#allocation2], 4
      %s24 = int_to_ptr.vmem [resolvable:$true] %s23
      %29 = dma.hbm_to_vmem [thread:$0]  %s22, 256, %s24, [#allocation3], 128, 128, 8
    $region5: #{tpu_custom_call.1} parent=1 // pred_fallthru
      _
    // Predicated region
    $region6: #{tpu_custom_call.1} parent=1 // pred_check
      _
    $region7: #{tpu_custom_call.1} parent=1 // pred_check_branch
      %31 = sbr.rel (0) target = $region9
    $region8: #{tpu_custom_call.1} parent=1 // pred_region
      %s32 = sadd.s32 0, 0
      %p33 = scmp.lt.s32.totalorder %s32, 0
      %s34 = scalar_select %p33, %s32, 0
      %s36 = ssub.s32 256, 256
      %37 = vsyncadd [#allocation6], %s36
      %s38 = smul.addr %s34, 128
      %s39 = scalar_lea.hbm %s1, %s38
      %s40 = sshll.u32 [#allocation5], 4
      %s41 = int_to_ptr.vmem [resolvable:$true] %s40
      %46 = dma.hbm_to_vmem [thread:$0]  %s39, 256, %s41, [#allocation6], 128, 128, 8
    $region9: #{tpu_custom_call.1} parent=1 // pred_fallthru
      _
    // Predicated region
    $region10: #{tpu_custom_call.1} parent=1 // pred_check
      _
    $region11: #{tpu_custom_call.1} parent=1 // pred_check_branch
      %48 = sbr.rel (0) target = $region13
    $region12: #{tpu_custom_call.1} parent=1 // pred_region
      %49 = dma.done [#allocation3], 256
    $region13: #{tpu_custom_call.1} parent=1 // pred_fallthru
      _
    // Predicated region
    $region14: #{tpu_custom_call.1} parent=1 // pred_check
      _
    $region15: #{tpu_custom_call.1} parent=1 // pred_check_branch
      %51 = sbr.rel (0) target = $region17
    $region16: #{tpu_custom_call.1} parent=1 // pred_region
      %52 = dma.done [#allocation6], 256
    $region17: #{tpu_custom_call.1} parent=1 // pred_fallthru
      _
    %s53 = sadd.s32 0, 0
    %p54 = scmp.lt.s32.totalorder %s53, 0
    %s55 = scalar_select %p54, %s53, 0
    %s56 = sadd.s32 0, 0
    %p57 = scmp.lt.s32.totalorder %s56, 0
    %s58 = scalar_select %p57, %s56, 0
    %p59 = scmp.eq.s32.totalorder 0, 0
    // Predicated region
    $region18: #{tpu_custom_call.1} parent=1 // pred_check
      %p60 = pneg %p59
    $region19: #{tpu_custom_call.1} parent=1 // pred_check_branch
      %62 = sbr.rel (%p60) target = $region21
    $region20: #{tpu_custom_call.1} parent=1 // pred_region
      %63 = vst [vmem:[#allocation7] sm:$0x3] 0.0
      %64 = vst [vmem:[#allocation8] sm:$0x3] 0.0
    $region21: #{tpu_custom_call.1} parent=1 // pred_fallthru
      _
    %v65 = vld [vmem:[#allocation2] sm:$0xff]
    %v66 = vld [vmem:[#allocation2 + $0x8] sm:$0xff]
    %v67 = vld [vmem:[#allocation5] sm:$0xff]
    %v68 = vld [vmem:[#allocation5 + $0x8] sm:$0xff]
    %v69 = vld [vmem:[#allocation7] sm:$0x3]
    %v70 = vmul.f32 %v65, %v67
    %v71 = vmul.f32 %v66, %v68
    %v72 = vrot.slane %v70, 4
    %v73 = vadd.f32 %v70, %v72
    %v74 = vrot.slane %v73, 2
    %v75 = vadd.f32 %v73, %v74
    %v76 = vrot.slane %v75, 1
    %v77 = vadd.f32 %v75, %v76
    %v78 = vrot.slane %v71, 4
    %v79 = vadd.f32 %v71, %v78
    %v80 = vrot.slane %v79, 2
    %v81 = vadd.f32 %v79, %v80
    %v82 = vrot.slane %v81, 1
    %v83 = vadd.f32 %v81, %v82
    %vm86 = vcmask 1041409
    %v87 = vsel %vm86, %v83, %v77
    %v89 = vadd.f32 %v69, %v87
    %90 = vst [vmem:[#allocation7] sm:$0x3] %v89
    %v91 = vld [vmem:[#allocation8] sm:$0x3]
    %v92 = vadd.f32 %v65, %v67
    %v93 = vadd.f32 %v66, %v68
    %v94 = vrot.slane %v92, 4
    %v95 = vadd.f32 %v92, %v94
    %v96 = vrot.slane %v95, 2
    %v97 = vadd.f32 %v95, %v96
    %v98 = vrot.slane %v97, 1
    %v99 = vadd.f32 %v97, %v98
    %v100 = vrot.slane %v93, 4
    %v101 = vadd.f32 %v93, %v100
    %v102 = vrot.slane %v101, 2
    %v103 = vadd.f32 %v101, %v102
    %v104 = vrot.slane %v103, 1
    %v105 = vadd.f32 %v103, %v104
    %v108 = vsel %vm86, %v105, %v99
    %v110 = vadd.f32 %v91, %v108
    %111 = vst [vmem:[#allocation8] sm:$0x3] %v110
    // Predicated region
    $region22: #{tpu_custom_call.1} parent=1 // pred_check
      _
    $region23: #{tpu_custom_call.1} parent=1 // pred_check_branch
      %113 = sbr.rel (0) target = $region25
    $region24: #{tpu_custom_call.1} parent=1 // pred_region
      %s115 = ssub.s32 32, 32
      %116 = vsyncadd [#allocation4], %s115
      %s118 = sshll.u32 [#allocation7], 4
      %s119 = int_to_ptr.vmem [resolvable:$true] %s118
      %121 = dma.vmem_to_hbm [thread:$0]  %s119, 32, %s2, [#allocation4]
    $region25: #{tpu_custom_call.1} parent=1 // pred_fallthru
      _
    // Predicated region
    $region26: #{tpu_custom_call.1} parent=1 // pred_check
      _
    $region27: #{tpu_custom_call.1} parent=1 // pred_check_branch
      %123 = sbr.rel (0) target = $region29
    $region28: #{tpu_custom_call.1} parent=1 // pred_region
      %s125 = ssub.s32 32, 32
      %126 = vsyncadd [#allocation9], %s125
      %s128 = sshll.u32 [#allocation8], 4
      %s129 = int_to_ptr.vmem [resolvable:$true] %s128
      %131 = dma.vmem_to_hbm [thread:$0]  %s129, 32, %s3, [#allocation9]
    $region29: #{tpu_custom_call.1} parent=1 // pred_fallthru
      _
    // Predicated region
    $region30: #{tpu_custom_call.1} parent=1 // pred_check
      _
    $region31: #{tpu_custom_call.1} parent=1 // pred_check_branch
      %133 = sbr.rel (0) target = $region33
    $region32: #{tpu_custom_call.1} parent=1 // pred_region
      %134 = dma.done [#allocation4], 32
    $region33: #{tpu_custom_call.1} parent=1 // pred_fallthru
      _
    // Predicated region
    $region34: #{tpu_custom_call.1} parent=1 // pred_check
      _
    $region35: #{tpu_custom_call.1} parent=1 // pred_check_branch
      %136 = sbr.rel (0) target = $region37
    $region36: #{tpu_custom_call.1} parent=1 // pred_region
      %137 = dma.done [#allocation9], 32
    $region37: #{tpu_custom_call.1} parent=1 // pred_fallthru
      _
    %138 = vsyncpa [#allocation3], 1
    %139 = vsyncpa [#allocation6], 1
    %140 = vsyncpa [#allocation4], 1
    %141 = vsyncpa [#allocation9], 1

</llo_original>
